<compile_context>
chip_gen: v6e
topology: v6e:2x2x1
jax: 0.10.0
libtpu: 0.0.40
codegen_flags: <defaults>
</compile_context>

<pallas_src>
import functools
import math

import jax
import jax.numpy as jnp
from jax.experimental import pallas as pl
from jax.experimental.pallas import tpu as pltpu

BN_EPS = 1e-5


# ----------------------------------------------------------------------------
# Helpers
# ----------------------------------------------------------------------------
def _round_up(n, m):
    return ((n + m - 1) // m) * m


def _vmem_budget_bytes():
    """Per-generation scoped-VMEM budget (v5e/v6e: 128 MiB, v7x: 64 MiB phys)."""
    cap = 64 * 1024 * 1024          # conservative (v7x) fallback
    try:
        info = pltpu.get_tpu_info()
        cap = int(getattr(info, "vmem_capacity_bytes", cap))
    except Exception:
        pass
    return int(min(cap * 3 // 4, 96 * 1024 * 1024))


def _choose_tile_m(m, k, x_bytes_per_elt):
    """Large row tiles amortize the ~0.35us/grid-step overhead; keep the
    double-buffered x block modest and TM a multiple of 16 so the bf16
    h-cache sublane packing stays full (no tiny-tile candidates)."""
    cap = 2048
    while cap > 16 and cap * k * x_bytes_per_elt * 2 > 16 * 1024 * 1024:
        cap //= 2
    if m <= cap:
        return max(_round_up(m, 16), 16)
    return cap


# ----------------------------------------------------------------------------
# Kernels
# ----------------------------------------------------------------------------
def _fused_kernel(x_ref, w1_ref, b1_ref, gamma_ref, beta_ref, wh_ref, bh_ref,
                  out_ref, h_cache, stat_ref, ss_ref, *,
                  m_total, tile_m, out_dim):
    """grid = (2, n_tiles).  phase 0: stats + h-cache fill.  phase 1: encode."""
    p = pl.program_id(0)          # phase
    i = pl.program_id(1)          # row-tile index
    n_tiles = pl.num_programs(1)

    @pl.when(p == 0)
    def _phase0():
        @pl.when(i == 0)
        def _():
            stat_ref[...] = jnp.zeros_like(stat_ref)

        h = jnp.dot(x_ref[...].astype(jnp.bfloat16), w1_ref[...],
                    preferred_element_type=jnp.float32)
        h = h + b1_ref[...]

        # mask garbage tail rows (cdiv grid) out of the batch statistics
        row = jax.lax.broadcasted_iota(jnp.int32, h.shape, 0) + i * tile_m
        hm = jnp.where(row < m_total, h, 0.0)
        # NOTE: E[h^2]-E[h]^2 in f32 (naive); fine at these scales, switch to a
        # centered/Welford combine if M grows very large.
        stat_ref[...] += jnp.concatenate(
            [jnp.sum(hm, axis=0, keepdims=True),
             jnp.sum(hm * hm, axis=0, keepdims=True)], axis=0)

        off = pl.multiple_of(i * tile_m, tile_m)
        h_cache[pl.ds(off, tile_m), :] = h.astype(jnp.bfloat16)

        @pl.when(i == n_tiles - 1)
        def _finalize():
            inv_m = 1.0 / float(m_total)
            mu = stat_ref[0:1, :] * inv_m
            var = stat_ref[1:2, :] * inv_m - mu * mu          # biased variance
            inv_std = jax.lax.rsqrt(var + BN_EPS)
            scale = gamma_ref[...] * inv_std                  # gamma padded w/ 0
            shift = beta_ref[...] - mu * scale
            ss_ref[0:1, :] = scale
            ss_ref[1:2, :] = shift

    @pl.when(p == 1)
    def _phase1():
        off = pl.multiple_of(i * tile_m, tile_m)
        h = h_cache[pl.ds(off, tile_m), :].astype(jnp.float32)
        h = h * ss_ref[0:1, :] + ss_ref[1:2, :]
        h = jnp.maximum(h, 0.0)
        y = jnp.dot(h.astype(jnp.bfloat16), wh_ref[...],
                    preferred_element_type=jnp.float32)
        y = y + bh_ref[...]
        # lanes [0,O) -> mean, [O,2O) -> exp(logvar/2), rest is zero padding
        lane = jax.lax.broadcasted_iota(jnp.int32, y.shape, 1)
        is_logvar = (lane >= out_dim) & (lane < 2 * out_dim)
        out_ref[...] = jnp.where(is_logvar, jnp.exp(y * 0.5), y).astype(out_ref.dtype)


def _stats_kernel(x_ref, w1_ref, b1_ref, stat_ref, *,
                  m_total, tile_m, tiles_per_shard):
    """Fallback pass 1: per-shard partial sum/sumsq of h = x@W1+b1."""
    s = pl.program_id(0)
    t = pl.program_id(1)

    @pl.when(t == 0)
    def _():
        stat_ref[...] = jnp.zeros_like(stat_ref)

    h = jnp.dot(x_ref[...].astype(jnp.bfloat16), w1_ref[...],
                preferred_element_type=jnp.float32)
    h = h + b1_ref[...]
    row = (jax.lax.broadcasted_iota(jnp.int32, h.shape, 0)
           + (s * tiles_per_shard + t) * tile_m)
    hm = jnp.where(row < m_total, h, 0.0)
    stat_ref[...] += jnp.concatenate(
        [jnp.sum(hm, axis=0, keepdims=True),
         jnp.sum(hm * hm, axis=0, keepdims=True)], axis=0)


def _encode_kernel(ss_ref, x_ref, w1_ref, b1_ref, wh_ref, bh_ref, out_ref, *,
                   out_dim):
    """Fallback pass 2: recompute h, BN affine, ReLU, fused heads, exp, store."""
    h = jnp.dot(x_ref[...].astype(jnp.bfloat16), w1_ref[...],
                preferred_element_type=jnp.float32)
    h = h + b1_ref[...]
    h = h * ss_ref[0:1, :] + ss_ref[1:2, :]
    h = jnp.maximum(h, 0.0)
    y = jnp.dot(h.astype(jnp.bfloat16), wh_ref[...],
                preferred_element_type=jnp.float32)
    y = y + bh_ref[...]
    lane = jax.lax.broadcasted_iota(jnp.int32, y.shape, 1)
    is_logvar = (lane >= out_dim) & (lane < 2 * out_dim)
    out_ref[...] = jnp.where(is_logvar, jnp.exp(y * 0.5), y).astype(out_ref.dtype)


# ----------------------------------------------------------------------------
# Parameter handling
# ----------------------------------------------------------------------------
def init_params(key, input_dim, hidden_dim, output_dim):
    """Kaiming-normal (fan_in, relu) init, zero biases — logical (unpadded)
    parameters, weights stored pre-transposed to (in, out)."""
    k1, k2, k3 = jax.random.split(key, 3)

    def kaiming(k, fan_in, fan_out):
        std = math.sqrt(2.0 / fan_in)
        return jax.random.normal(k, (fan_in, fan_out), dtype=jnp.float32) * std

    return dict(
        w1=kaiming(k1, input_dim, hidden_dim),
        b1=jnp.zeros((1, hidden_dim), jnp.float32),
        gamma=jnp.ones((1, hidden_dim), jnp.float32),   # BatchNorm1d weight
        beta=jnp.zeros((1, hidden_dim), jnp.float32),   # BatchNorm1d bias
        wm=kaiming(k2, hidden_dim, output_dim),
        bm=jnp.zeros((1, output_dim), jnp.float32),
        wv=kaiming(k3, hidden_dim, output_dim),
        bv=jnp.zeros((1, output_dim), jnp.float32),
    )


def pack_params(params, input_dim, hidden_dim, output_dim):
    """Pad lane dims to 128, fuse the two heads, cast matmul weights to bf16."""
    hp = max(_round_up(hidden_dim, 128), 128)
    op2 = max(_round_up(2 * output_dim, 128), 128)

    w1p = (jnp.zeros((input_dim, hp), jnp.float32)
           .at[:, :hidden_dim].set(params["w1"])).astype(jnp.bfloat16)
    b1p = jnp.zeros((1, hp), jnp.float32).at[:, :hidden_dim].set(params["b1"])
    # gamma padded with ZEROS so padded channels are exactly 0 after BN
    gammap = jnp.zeros((1, hp), jnp.float32).at[:, :hidden_dim].set(params["gamma"])
    betap = jnp.zeros((1, hp), jnp.float32).at[:, :hidden_dim].set(params["beta"])

    wh = jnp.concatenate([params["wm"], params["wv"]], axis=1)   # (H, 2*O)
    whp = (jnp.zeros((hp, op2), jnp.float32)
           .at[:hidden_dim, :2 * output_dim].set(wh)).astype(jnp.bfloat16)
    bh = jnp.concatenate([params["bm"], params["bv"]], axis=1)
    bhp = jnp.zeros((1, op2), jnp.float32).at[:, :2 * output_dim].set(bh)

    return dict(w1=w1p, b1=b1p, gamma=gammap, beta=betap, wh=whp, bh=bhp)


# ----------------------------------------------------------------------------
# Forward wrapper
# ----------------------------------------------------------------------------
def vae_encoder_forward(x, packed, output_dim):
    """x: (bs, N, d, d) -> (mean (bs, N, m), var (bs, N, m)), training-mode BN."""
    bs, n, d1, d2 = x.shape
    m_rows = bs * n
    k = d1 * d2
    hp = packed["w1"].shape[1]
    op2 = packed["wh"].shape[1]

    # reshape is a free metadata change; NO dtype cast here (bf16 cast happens
    # in-kernel, hidden under the input DMA -> one less HBM round trip).
    xf = x.reshape(m_rows, k)
    x_bytes = xf.dtype.itemsize

    tm = _choose_tile_m(m_rows, k, x_bytes)
    n_tiles = pl.cdiv(m_rows, tm)
    budget = _vmem_budget_bytes()

    # fused-path VMEM footprint: resident bf16 h-cache + double-buffered
    # x / out blocks + weights + small stats
    h_cache_bytes = n_tiles * tm * hp * 2
    fused_bytes = (h_cache_bytes
                   + 2 * tm * k * x_bytes + 2 * tm * op2 * 2
                   + k * hp * 2 + hp * op2 * 2 + 6 * hp * 4
                   + (1 << 20))

    flops = 2 * m_rows * (k * hp + hp * op2)
    bytes_accessed = (m_rows * k * x_bytes + k * hp * 2 + hp * op2 * 2
                      + m_rows * op2 * 2)
    cost = pl.CostEstimate(flops=flops,
                           transcendentals=m_rows * output_dim,
                           bytes_accessed=bytes_accessed)

    if fused_bytes <= budget:
        # ---- single pallas_call: phase 0 (stats + h-cache), phase 1 (encode)
        fused = pl.pallas_call(
            functools.partial(_fused_kernel, m_total=m_rows, tile_m=tm,
                              out_dim=output_dim),
            out_shape=jax.ShapeDtypeStruct((m_rows, op2), jnp.bfloat16),
            grid=(2, n_tiles),
            in_specs=[
                pl.BlockSpec((tm, k), lambda p, i: (i * (1 - p), 0)),  # x: only phase 0
                pl.BlockSpec((k, hp), lambda p, i: (0, 0)),            # W1
                pl.BlockSpec((1, hp), lambda p, i: (0, 0)),            # b1
                pl.BlockSpec((1, hp), lambda p, i: (0, 0)),            # gamma
                pl.BlockSpec((1, hp), lambda p, i: (0, 0)),            # beta
                pl.BlockSpec((hp, op2), lambda p, i: (0, 0)),          # Wh
                pl.BlockSpec((1, op2), lambda p, i: (0, 0)),           # bh
            ],
            out_specs=pl.BlockSpec((tm, op2), lambda p, i: (i * p, 0)),
            scratch_shapes=[
                pltpu.VMEM((n_tiles * tm, hp), jnp.bfloat16),   # resident h cache
                pltpu.VMEM((2, hp), jnp.float32),               # sum / sumsq
                pltpu.VMEM((2, hp), jnp.float32),               # scale / shift
            ],
            compiler_params=pltpu.CompilerParams(
                dimension_semantics=("arbitrary", "arbitrary"),
                vmem_limit_bytes=budget,
            ),
            cost_estimate=cost,
        )(xf, packed["w1"], packed["b1"], packed["gamma"], packed["beta"],
          packed["wh"], packed["bh"])
    else:
        # ---- fallback (h does not fit VMEM): two passes over X --------------
        num_shards = 2 if (n_tiles % 2 == 0 and n_tiles >= 2) else 1
        tiles_per_shard = n_tiles // num_shards

        partial = pl.pallas_call(
            functools.partial(_stats_kernel, m_total=m_rows, tile_m=tm,
                              tiles_per_shard=tiles_per_shard),
            out_shape=jax.ShapeDtypeStruct((num_shards, 2, hp), jnp.float32),
            grid=(num_shards, tiles_per_shard),
            in_specs=[
                pl.BlockSpec((tm, k),
                             lambda s, t: (s * tiles_per_shard + t, 0)),
                pl.BlockSpec((k, hp), lambda s, t: (0, 0)),
                pl.BlockSpec((1, hp), lambda s, t: (0, 0)),
            ],
            out_specs=pl.BlockSpec((None, 2, hp), lambda s, t: (s, 0, 0)),
            compiler_params=pltpu.CompilerParams(
                dimension_semantics=("parallel", "arbitrary"),  # both v7x TCs
                vmem_limit_bytes=budget,
            ),
        )(xf, packed["w1"], packed["b1"])

        # tiny combine + gamma/beta fold in plain JAX
        sums = jnp.sum(partial, axis=0)                     # (2, hp)
        mu = sums[0:1, :] / m_rows
        var = sums[1:2, :] / m_rows - mu * mu               # biased variance
        inv_std = jax.lax.rsqrt(var + BN_EPS)
        scale = packed["gamma"] * inv_std
        shift = packed["beta"] - mu * scale
        ss = jnp.concatenate([scale, shift], axis=0)        # (2, hp)

        fused = pl.pallas_call(
            functools.partial(_encode_kernel, out_dim=output_dim),
            out_shape=jax.ShapeDtypeStruct((m_rows, op2), jnp.bfloat16),
            grid=(n_tiles,),
            in_specs=[
                pl.BlockSpec((2, hp), lambda i: (0, 0)),
                pl.BlockSpec((tm, k), lambda i: (i, 0)),
                pl.BlockSpec((k, hp), lambda i: (0, 0)),
                pl.BlockSpec((1, hp), lambda i: (0, 0)),
                pl.BlockSpec((hp, op2), lambda i: (0, 0)),
                pl.BlockSpec((1, op2), lambda i: (0, 0)),
            ],
            out_specs=pl.BlockSpec((tm, op2), lambda i: (i, 0)),
            compiler_params=pltpu.CompilerParams(
                dimension_semantics=("parallel",),
                vmem_limit_bytes=budget,
            ),
            cost_estimate=cost,
        )(ss, xf, packed["w1"], packed["b1"], packed["wh"], packed["bh"])

    mean = fused[:, :output_dim].astype(jnp.float32).reshape(bs, n, output_dim)
    var_out = fused[:, output_dim:2 * output_dim].astype(jnp.float32)
    var_out = var_out.reshape(bs, n, output_dim)
    return mean, var_out


# ----------------------------------------------------------------------------
# Pure-JAX f32 reference (mirrors the PyTorch forward, training-mode BN)
# ----------------------------------------------------------------------------
def reference_forward(x, params):
    bs, n, d1, d2 = x.shape
    xf = x.reshape(bs * n, d1 * d2).astype(jnp.float32)
    h = xf @ params["w1"] + params["b1"]
    mu = jnp.mean(h, axis=0, keepdims=True)
    var_h = jnp.mean((h - mu) ** 2, axis=0, keepdims=True)
    h = (h - mu) / jnp.sqrt(var_h + BN_EPS) * params["gamma"] + params["beta"]
    h = jnp.maximum(h, 0.0)
    mean = h @ params["wm"] + params["bm"]
    var = jnp.exp((h @ params["wv"] + params["bv"]) / 2.0)
    m = params["bm"].shape[-1]
    return mean.reshape(bs, n, m), var.reshape(bs, n, m)


if __name__ == "__main__":
    # Small-shape correctness smoke test only (benchmark/tune TM at M >= 8K).
    bs, N, d = 2, 8, 16
    input_dim = d * d          # 256
    hidden_dim = 32
    output_dim = 16

    key = jax.random.PRNGKey(0)
    kx, kp = jax.random.split(key)
    x = jax.random.normal(kx, (bs, N, d, d), dtype=jnp.float32)

    params = init_params(kp, input_dim, hidden_dim, output_dim)
    packed = pack_params(params, input_dim, hidden_dim, output_dim)

    mean, var = vae_encoder_forward(x, packed, output_dim)
    jax.block_until_ready((mean, var))

    # cross-check against plain-JAX f32 reference (loose tol: bf16 operands)
    mean_ref, var_ref = reference_forward(x, params)
    assert mean.shape == (bs, N, output_dim) and var.shape == (bs, N, output_dim)
    assert jnp.allclose(mean, mean_ref, atol=5e-2, rtol=5e-2)
    assert jnp.allclose(var, var_ref, atol=5e-2, rtol=5e-2)
    assert bool(jnp.all(var > 0.0))

    print("KERNEL_OK")
</pallas_src>

<mosaic_0001>
module attributes {stable_mosaic.version = 11 : i64} {
  func.func @_fused_kernel(%arg0: i32, %arg1: i32, %arg2: memref<16x256xf32, #tpu.memory_space<vmem>>, %arg3: memref<256x128xbf16, #tpu.memory_space<vmem>>, %arg4: memref<1x128xf32, #tpu.memory_space<vmem>>, %arg5: memref<1x128xf32, #tpu.memory_space<vmem>>, %arg6: memref<1x128xf32, #tpu.memory_space<vmem>>, %arg7: memref<128x128xbf16, #tpu.memory_space<vmem>>, %arg8: memref<1x128xf32, #tpu.memory_space<vmem>>, %arg9: memref<16x128xbf16, #tpu.memory_space<vmem>>, %arg10: memref<16x128xbf16, #tpu.memory_space<vmem>>, %arg11: memref<2x128xf32, #tpu.memory_space<vmem>>, %arg12: memref<2x128xf32, #tpu.memory_space<vmem>>) attributes {dimension_semantics = [#tpu.dimension_semantics<arbitrary>, #tpu.dimension_semantics<arbitrary>], iteration_bounds = array<i64: 2, 1>, scalar_prefetch = 0 : i64, scratch_operands = 3 : i64, tpu.core_type = #tpu.core_type<tc>, window_params = [{transform_indices = @transform_0, window_bounds = array<i64: 16, 256>}, {pipeline_mode = #tpu.pipeline_mode<synchronous>, transform_indices = @transform_1, window_bounds = array<i64: 256, 128>}, {pipeline_mode = #tpu.pipeline_mode<synchronous>, transform_indices = @transform_2, window_bounds = array<i64: 1, 128>}, {pipeline_mode = #tpu.pipeline_mode<synchronous>, transform_indices = @transform_3, window_bounds = array<i64: 1, 128>}, {pipeline_mode = #tpu.pipeline_mode<synchronous>, transform_indices = @transform_4, window_bounds = array<i64: 1, 128>}, {pipeline_mode = #tpu.pipeline_mode<synchronous>, transform_indices = @transform_5, window_bounds = array<i64: 128, 128>}, {pipeline_mode = #tpu.pipeline_mode<synchronous>, transform_indices = @transform_6, window_bounds = array<i64: 1, 128>}, {transform_indices = @transform_7, window_bounds = array<i64: 16, 128>}]} {
    %c0_i32 = arith.constant 0 : i32
    %0 = arith.cmpi eq, %arg0, %c0_i32 : i32
    %1 = arith.extui %0 : i1 to i32
    %c0_i32_0 = arith.constant 0 : i32
    %2 = arith.cmpi ne, %1, %c0_i32_0 : i32
    scf.if %2 {
      %c0_i32_2 = arith.constant 0 : i32
      %6 = arith.cmpi eq, %arg1, %c0_i32_2 : i32
      %7 = arith.extui %6 : i1 to i32
      %c0_i32_3 = arith.constant 0 : i32
      %8 = arith.cmpi ne, %7, %c0_i32_3 : i32
      scf.if %8 {
        %cst_21 = arith.constant 0.000000e+00 : f32
        %41 = vector.broadcast %cst_21 : f32 to vector<2x128xf32>
        %c0_22 = arith.constant 0 : index
        %c0_23 = arith.constant 0 : index
        %42 = vector.load %arg11[%c0_22, %c0_23] : memref<2x128xf32, #tpu.memory_space<vmem>>, vector<2x128xf32>
        tpu.vector_store %arg11[%c0_22, %c0_23], %41 {strides = array<i32>} : memref<2x128xf32, #tpu.memory_space<vmem>>, vector<2x128xf32>,
      } else {
      }
      %c0 = arith.constant 0 : index
      %c0_4 = arith.constant 0 : index
      %9 = vector.load %arg2[%c0, %c0_4] : memref<16x256xf32, #tpu.memory_space<vmem>>, vector<16x256xf32>
      %10 = arith.truncf %9 : vector<16x256xf32> to vector<16x256xbf16>
      %c0_5 = arith.constant 0 : index
      %c0_6 = arith.constant 0 : index
      %11 = vector.load %arg3[%c0_5, %c0_6] : memref<256x128xbf16, #tpu.memory_space<vmem>>, vector<256x128xbf16>
      %cst = arith.constant dense<0.000000e+00> : vector<16x128xf32>
      %12 = tpu.matmul %10, %11, %cst {dimension_numbers = #tpu.dot_dimension_numbers<[1], [0], [0], [1], [0, 0, 1, 1], [], []>} : vector<16x256xbf16>, vector<256x128xbf16>, vector<16x128xf32> -> vector<16x128xf32>
      %c0_7 = arith.constant 0 : index
      %c0_8 = arith.constant 0 : index
      %13 = vector.load %arg4[%c0_7, %c0_8] : memref<1x128xf32, #tpu.memory_space<vmem>>, vector<1x128xf32>
      %14 = vector.broadcast %13 : vector<1x128xf32> to vector<16x128xf32>
      %15 = arith.addf %12, %14 : vector<16x128xf32>
      %16 = tpu.iota {dimensions = array<i32: 0>} : vector<16x128xi32>
      %c16_i32 = arith.constant 16 : i32
      %17 = arith.muli %arg1, %c16_i32 : i32
      %18 = vector.broadcast %17 : i32 to vector<16x128xi32>
      %19 = arith.addi %16, %18 : vector<16x128xi32>
      %c16_i32_9 = arith.constant 16 : i32
      %20 = vector.broadcast %c16_i32_9 : i32 to vector<16x128xi32>
      %21 = arith.cmpi slt, %19, %20 : vector<16x128xi32>
      %cst_10 = arith.constant 0.000000e+00 : f32
      %22 = vector.broadcast %cst_10 : f32 to vector<16x128xf32>
      %23 = arith.select %21, %15, %22 : vector<16x128xi1>, vector<16x128xf32>
      %c0_11 = arith.constant 0 : index
      %c0_12 = arith.constant 0 : index
      %24 = vector.load %arg11[%c0_11, %c0_12] : memref<2x128xf32, #tpu.memory_space<vmem>>, vector<2x128xf32>
      %cst_13 = arith.constant dense<0.000000e+00> : vector<128xf32>
      %25 = vector.multi_reduction <add>, %23, %cst_13 [0] : vector<16x128xf32> to vector<128xf32>
      %26 = vector.shape_cast %25 : vector<128xf32> to vector<1x128xf32>
      %27 = arith.mulf %23, %23 : vector<16x128xf32>
      %cst_14 = arith.constant dense<0.000000e+00> : vector<128xf32>
      %28 = vector.multi_reduction <add>, %27, %cst_14 [0] : vector<16x128xf32> to vector<128xf32>
      %29 = vector.shape_cast %28 : vector<128xf32> to vector<1x128xf32>
      %30 = tpu.concatenate %26, %29 in 0 : vector<1x128xf32>, vector<1x128xf32> -> vector<2x128xf32>
      %31 = arith.addf %24, %30 : vector<2x128xf32>
      %c0_15 = arith.constant 0 : index
      %c0_16 = arith.constant 0 : index
      %32 = vector.load %arg11[%c0_15, %c0_16] : memref<2x128xf32, #tpu.memory_space<vmem>>, vector<2x128xf32>
      tpu.vector_store %arg11[%c0_15, %c0_16], %31 {strides = array<i32>} : memref<2x128xf32, #tpu.memory_space<vmem>>, vector<2x128xf32>,
      %c16_i32_17 = arith.constant 16 : i32
      %33 = arith.muli %arg1, %c16_i32_17 : i32
      %34 = tpu.assume_multiple %33, 16 : i32
      %35 = arith.truncf %15 : vector<16x128xf32> to vector<16x128xbf16>
      %36 = arith.index_cast %34 : i32 to index
      %c0_18 = arith.constant 0 : index
      %37 = vector.load %arg10[%36, %c0_18] : memref<16x128xbf16, #tpu.memory_space<vmem>>, vector<16x128xbf16>
      tpu.vector_store %arg10[%36, %c0_18], %35 {strides = array<i32>} : memref<16x128xbf16, #tpu.memory_space<vmem>>, vector<16x128xbf16>,
      %c0_i32_19 = arith.constant 0 : i32
      %38 = arith.cmpi eq, %arg1, %c0_i32_19 : i32
      %39 = arith.extui %38 : i1 to i32
      %c0_i32_20 = arith.constant 0 : i32
      %40 = arith.cmpi ne, %39, %c0_i32_20 : i32
      scf.if %40 {
        %c0_21 = arith.constant 0 : index
        %c0_22 = arith.constant 0 : index
        %41 = vector.load %arg11[%c0_21, %c0_22] : memref<2x128xf32, #tpu.memory_space<vmem>>, vector<1x128xf32>
        %cst_23 = arith.constant 6.250000e-02 : f32
        %42 = vector.broadcast %cst_23 : f32 to vector<1x128xf32>
        %43 = arith.mulf %41, %42 : vector<1x128xf32>
        %c1 = arith.constant 1 : index
        %c0_24 = arith.constant 0 : index
        %44 = vector.load %arg11[%c1, %c0_24] : memref<2x128xf32, #tpu.memory_space<vmem>>, vector<1x128xf32>
        %cst_25 = arith.constant 6.250000e-02 : f32
        %45 = vector.broadcast %cst_25 : f32 to vector<1x128xf32>
        %46 = arith.mulf %44, %45 : vector<1x128xf32>
        %47 = arith.mulf %43, %43 : vector<1x128xf32>
        %48 = arith.subf %46, %47 : vector<1x128xf32>
        %cst_26 = arith.constant 9.99999974E-6 : f32
        %49 = vector.broadcast %cst_26 : f32 to vector<1x128xf32>
        %50 = arith.addf %48, %49 : vector<1x128xf32>
        %51 = math.rsqrt %50 : vector<1x128xf32>
        %c0_27 = arith.constant 0 : index
        %c0_28 = arith.constant 0 : index
        %52 = vector.load %arg5[%c0_27, %c0_28] : memref<1x128xf32, #tpu.memory_space<vmem>>, vector<1x128xf32>
        %53 = arith.mulf %52, %51 : vector<1x128xf32>
        %c0_29 = arith.constant 0 : index
        %c0_30 = arith.constant 0 : index
        %54 = vector.load %arg6[%c0_29, %c0_30] : memref<1x128xf32, #tpu.memory_space<vmem>>, vector<1x128xf32>
        %55 = arith.mulf %43, %53 : vector<1x128xf32>
        %56 = arith.subf %54, %55 : vector<1x128xf32>
        %c0_31 = arith.constant 0 : index
        %c0_32 = arith.constant 0 : index
        %57 = vector.load %arg12[%c0_31, %c0_32] : memref<2x128xf32, #tpu.memory_space<vmem>>, vector<1x128xf32>
        tpu.vector_store %arg12[%c0_31, %c0_32], %53 {strides = array<i32>} : memref<2x128xf32, #tpu.memory_space<vmem>>, vector<1x128xf32>,
        %c1_33 = arith.constant 1 : index
        %c0_34 = arith.constant 0 : index
        %58 = vector.load %arg12[%c1_33, %c0_34] : memref<2x128xf32, #tpu.memory_space<vmem>>, vector<1x128xf32>
        tpu.vector_store %arg12[%c1_33, %c0_34], %56 {strides = array<i32>} : memref<2x128xf32, #tpu.memory_space<vmem>>, vector<1x128xf32>,
      } else {
      }
    } else {
    }
    %c1_i32 = arith.constant 1 : i32
    %3 = arith.cmpi eq, %arg0, %c1_i32 : i32
    %4 = arith.extui %3 : i1 to i32
    %c0_i32_1 = arith.constant 0 : i32
    %5 = arith.cmpi ne, %4, %c0_i32_1 : i32
    scf.if %5 {
      %c16_i32 = arith.constant 16 : i32
      %6 = arith.muli %arg1, %c16_i32 : i32
      %7 = tpu.assume_multiple %6, 16 : i32
      %8 = arith.index_cast %7 : i32 to index
      %c0 = arith.constant 0 : index
      %9 = vector.load %arg10[%8, %c0] : memref<16x128xbf16, #tpu.memory_space<vmem>>, vector<16x128xbf16>
      %10 = arith.extf %9 : vector<16x128xbf16> to vector<16x128xf32>
      %c0_2 = arith.constant 0 : index
      %c0_3 = arith.constant 0 : index
      %11 = vector.load %arg12[%c0_2, %c0_3] : memref<2x128xf32, #tpu.memory_space<vmem>>, vector<1x128xf32>
      %12 = vector.broadcast %11 : vector<1x128xf32> to vector<16x128xf32>
      %13 = arith.mulf %10, %12 : vector<16x128xf32>
      %c1 = arith.constant 1 : index
      %c0_4 = arith.constant 0 : index
      %14 = vector.load %arg12[%c1, %c0_4] : memref<2x128xf32, #tpu.memory_space<vmem>>, vector<1x128xf32>
      %15 = vector.broadcast %14 : vector<1x128xf32> to vector<16x128xf32>
      %16 = arith.addf %13, %15 : vector<16x128xf32>
      %cst = arith.constant 0.000000e+00 : f32
      %17 = vector.broadcast %cst : f32 to vector<16x128xf32>
      %18 = arith.maximumf %16, %17 : vector<16x128xf32>
      %19 = arith.truncf %18 : vector<16x128xf32> to vector<16x128xbf16>
      %c0_5 = arith.constant 0 : index
      %c0_6 = arith.constant 0 : index
      %20 = vector.load %arg7[%c0_5, %c0_6] : memref<128x128xbf16, #tpu.memory_space<vmem>>, vector<128x128xbf16>
      %cst_7 = arith.constant dense<0.000000e+00> : vector<16x128xf32>
      %21 = tpu.matmul %19, %20, %cst_7 {dimension_numbers = #tpu.dot_dimension_numbers<[1], [0], [0], [1], [0, 0, 1, 1], [], []>} : vector<16x128xbf16>, vector<128x128xbf16>, vector<16x128xf32> -> vector<16x128xf32>
      %c0_8 = arith.constant 0 : index
      %c0_9 = arith.constant 0 : index
      %22 = vector.load %arg8[%c0_8, %c0_9] : memref<1x128xf32, #tpu.memory_space<vmem>>, vector<1x128xf32>
      %23 = vector.broadcast %22 : vector<1x128xf32> to vector<16x128xf32>
      %24 = arith.addf %21, %23 : vector<16x128xf32>
      %25 = tpu.iota {dimensions = array<i32: 1>} : vector<16x128xi32>
      %c16_i32_10 = arith.constant 16 : i32
      %26 = vector.broadcast %c16_i32_10 : i32 to vector<16x128xi32>
      %27 = arith.cmpi sge, %25, %26 : vector<16x128xi32>
      %c32_i32 = arith.constant 32 : i32
      %28 = vector.broadcast %c32_i32 : i32 to vector<16x128xi32>
      %29 = arith.cmpi slt, %25, %28 : vector<16x128xi32>
      %30 = arith.andi %27, %29 : vector<16x128xi1>
      %cst_11 = arith.constant 5.000000e-01 : f32
      %31 = vector.broadcast %cst_11 : f32 to vector<16x128xf32>
      %32 = arith.mulf %24, %31 : vector<16x128xf32>
      %33 = math.exp %32 : vector<16x128xf32>
      %34 = arith.select %30, %33, %24 : vector<16x128xi1>, vector<16x128xf32>
      %35 = arith.truncf %34 : vector<16x128xf32> to vector<16x128xbf16>
      %c0_12 = arith.constant 0 : index
      %c0_13 = arith.constant 0 : index
      %36 = vector.load %arg9[%c0_12, %c0_13] : memref<16x128xbf16, #tpu.memory_space<vmem>>, vector<16x128xbf16>
      tpu.vector_store %arg9[%c0_12, %c0_13], %35 {strides = array<i32>} : memref<16x128xbf16, #tpu.memory_space<vmem>>, vector<16x128xbf16>,
    } else {
    }
    return
  }
  func.func @transform_0(%arg0: i32, %arg1: i32) -> (i32, i32) {
    %c1_i32 = arith.constant 1 : i32
    %0 = arith.subi %c1_i32, %arg0 : i32
    %1 = arith.muli %arg1, %0 : i32
    %c0_i32 = arith.constant 0 : i32
    %c0_i32_0 = arith.constant 0 : i32
    return %1, %c0_i32 : i32, i32
  }
  func.func @transform_1(%arg0: i32, %arg1: i32) -> (i32, i32) {
    %c0_i32 = arith.constant 0 : i32
    %c0_i32_0 = arith.constant 0 : i32
    %c0_i32_1 = arith.constant 0 : i32
    return %c0_i32, %c0_i32_0 : i32, i32
  }
  func.func @transform_2(%arg0: i32, %arg1: i32) -> (i32, i32) {
    %c0_i32 = arith.constant 0 : i32
    %c0_i32_0 = arith.constant 0 : i32
    %c0_i32_1 = arith.constant 0 : i32
    return %c0_i32, %c0_i32_0 : i32, i32
  }
  func.func @transform_3(%arg0: i32, %arg1: i32) -> (i32, i32) {
    %c0_i32 = arith.constant 0 : i32
    %c0_i32_0 = arith.constant 0 : i32
    %c0_i32_1 = arith.constant 0 : i32
    return %c0_i32, %c0_i32_0 : i32, i32
  }
  func.func @transform_4(%arg0: i32, %arg1: i32) -> (i32, i32) {
    %c0_i32 = arith.constant 0 : i32
    %c0_i32_0 = arith.constant 0 : i32
    %c0_i32_1 = arith.constant 0 : i32
    return %c0_i32, %c0_i32_0 : i32, i32
  }
  func.func @transform_5(%arg0: i32, %arg1: i32) -> (i32, i32) {
    %c0_i32 = arith.constant 0 : i32
    %c0_i32_0 = arith.constant 0 : i32
    %c0_i32_1 = arith.constant 0 : i32
    return %c0_i32, %c0_i32_0 : i32, i32
  }
  func.func @transform_6(%arg0: i32, %arg1: i32) -> (i32, i32) {
    %c0_i32 = arith.constant 0 : i32
    %c0_i32_0 = arith.constant 0 : i32
    %c0_i32_1 = arith.constant 0 : i32
    return %c0_i32, %c0_i32_0 : i32, i32
  }
  func.func @transform_7(%arg0: i32, %arg1: i32) -> (i32, i32) {
    %0 = arith.muli %arg1, %arg0 : i32
    %c0_i32 = arith.constant 0 : i32
    %c0_i32_0 = arith.constant 0 : i32
    return %0, %c0_i32 : i32, i32
  }
}

</mosaic_0001>

<llo_original>
// kernel: tpu_custom_call.1
$region0: #{tpu_custom_call.1}
  #allocation0 [shape = 'u32[]', space=smem, size = 0x4, offset = 0x4, fixed_abs, tag = 'smem constant byte address 0x4 - core index']
  #allocation1 [shape = 'u32[144,128]{1,0:T(1,128)}', space=vmem, size = 0x12000, scoped, tag = 'internal scratch']
  #allocation2 [shape = 'bf16[16,128]{1,0:T(8,128)(2,1)}', space=vmem, size = 0x1000, scoped, tag = 'scratch operand']
  #allocation3 [shape = 'f32[2,128]{1,0:T(2,128)}', space=vmem, size = 0x400, scoped, tag = 'scratch operand']
  #allocation4 [shape = 'f32[2,128]{1,0:T(2,128)}', space=vmem, size = 0x400, scoped, tag = 'scratch operand']
  %s0 = inlined_call_operand.hbm [shape: f32[16,256], index: 0, kind: input, shape index: {}]
  %s1 = inlined_call_operand.hbm [shape: bf16[256,128], index: 1, kind: input, shape index: {}]
  %s2 = inlined_call_operand.vmem [shape: f32[1,128], index: 2, kind: input, shape index: {}]
  %s3 = inlined_call_operand.vmem [shape: f32[1,128], index: 3, kind: input, shape index: {}]
  %s4 = inlined_call_operand.vmem [shape: f32[1,128], index: 4, kind: input, shape index: {}]
  %s5 = inlined_call_operand.hbm [shape: bf16[128,128], index: 5, kind: input, shape index: {}]
  %s6 = inlined_call_operand.vmem [shape: f32[1,128], index: 6, kind: input, shape index: {}]
  %s7 = inlined_call_operand.hbm [shape: bf16[16,128], index: 7, kind: output, shape index: {}]
  %s8 = sld [smem:[#allocation0]]
  $region89: #{tpu_custom_call.1} parent=0
    _
  %s10 = ssub.s32 1, %s8
  %s11 = scalar_select 0, %s10, %s8
  $region1: #{tpu_custom_call.1} parent=0
    #allocation5 [shape = 'u8[32768]{0}', space=vmem, size = 0x8000, scoped, tag = 'input window, operand 0']
    #allocation6 [shape = 's32[2]{0}', space=sflag, size = 0x8, scoped, tag = 'scoped memory for tpu_custom_call.1']
    #allocation7 [shape = 's32[2]{0}', space=sflag, size = 0x8, scoped, tag = 'scoped memory for tpu_custom_call.1']
    #allocation8 [shape = 'u8[65536]{0}', space=vmem, size = 0x10000, scoped, tag = 'input window, operand 1, single buffered']
    #allocation9 [shape = 's32[1]{0}', space=sflag, size = 0x4, scoped, tag = 'scoped memory for tpu_custom_call.1']
    #allocation10 [shape = 'u8[32768]{0}', space=vmem, size = 0x8000, scoped, tag = 'input window, operand 5, single buffered']
    #allocation11 [shape = 'u8[8192]{0}', space=vmem, size = 0x2000, scoped, tag = 'output window, operand 0']
    %12 = vsyncpa [#allocation6], 0
    %s13 = scalar_lea.sflag [#allocation6], 1
    %14 = vsyncpa %s13, 0
    %15 = vsyncpa [#allocation9], 0
    %16 = vsyncpa [#allocation7], 0
    %s17 = scalar_lea.sflag [#allocation7], 1
    %18 = vsyncpa %s17, 0
    loop: start=0, step=1, limit=4
    $region2: #{tpu_custom_call.1} parent=1 // loop_pre_header
      _
    $region3: #{tpu_custom_call.1} parent=1 // loop_header
      %s20 = sphi 0, %s24
      %p21 = scmp.ge.s32.totalorder %s20, 4
      %s27 = sphi 0, %s39
      %s28 = sphi 0, %s35
      %s29 = sphi 0, %s27
      %s30 = sphi 0, %s28
      %s31 = sphi 0, %s29
      %s32 = sphi 0, %s30
      %s46 = sphi 0, %s48
      %s49 = sphi 0, %s46
      %s50 = sphi 0, %s49
      %s66 = sphi 0, %s50
      %s70 = sphi 0, %s70
      %s72 = sphi 0, %s70
      %s73 = sphi 0, %s72
      %s87 = sphi 0, %s73
      %s91 = sphi 0, %s91
      %s93 = sphi 0, %s91
      %s94 = sphi 0, %s93
      %s108 = sphi 0, %s94
      %s112 = sphi 0, %s112
      %s114 = sphi 0, %s112
      %s115 = sphi 0, %s114
      %s129 = sphi 0, %s115
      %s133 = sphi 0, %s133
      %s135 = sphi 0, %s133
      %s136 = sphi 0, %s135
      %s150 = sphi 0, %s136
      %s154 = sphi 0, %s154
      %s156 = sphi 0, %s154
      %s157 = sphi 0, %s156
      %s171 = sphi 0, %s157
      %s175 = sphi 0, %s175
      %s177 = sphi 0, %s175
      %s178 = sphi 0, %s177
      %s192 = sphi 0, %s178
      %s200 = sphi 0, %s202
      %s203 = sphi 0, %s200
      %s204 = sphi 0, %s203
      %s220 = sphi 0, %s204
    $region4: #{tpu_custom_call.1} parent=1 // loop_header_branch
      %23 = sbr.rel (%p21) target = $region8
    $region5: #{tpu_custom_call.1} parent=1 // loop_body
      %s25 = ssub.s32 %s20, 1
      %s26 = ssub.s32 %s20, 2
      %s33 = sadd.s32 1, %s28
      %p34 = scmp.ge.s32.totalorder %s33, 1
      %s35 = scalar_select %p34, 0, %s33
      %s36 = sadd.s32 1, %s27
      %s37 = scalar_select %p34, %s36, %s27
      %p38 = scmp.ge.s32.totalorder %s37, 2
      %s39 = scalar_select %p38, 0, %s37
      %s40 = ssub.s32 1, %s27
      %s41 = smul.u32 %s28, %s40
      %s42 = ssub.s32 1, %s39
      %s43 = smul.u32 %s35, %s42
      %s44 = ssub.s32 %s41, %s43
      %p45 = scmp.eq.s32.totalorder %s44, 0
      %s47 = sadd.s32 %s46, 1
      %s48 = scalar_select %p45, %s46, %s47
      %p51 = pneg %p45
      %p52 = scmp.eq.s32.totalorder %s20, 1
      %p53 = por %p51, %p52
      %p54 = scmp.ne.s32.totalorder %s46, %s49
      %p55 = scmp.eq.s32.totalorder %s20, 0
      %p56 = por %p54, %p55
      %p57 = scmp.ne.s32.totalorder %s46, %s49
      %p58 = scmp.eq.s32.totalorder %s25, 1
      %p59 = por %p57, %p58
      %p60 = scmp.ne.s32.totalorder %s49, %s50
      %p61 = scmp.eq.s32.totalorder %s25, 0
      %p62 = por %p60, %p61
      %p63 = scmp.ne.s32.totalorder %s49, %s50
      %p64 = scmp.eq.s32.totalorder %s26, 1
      %p65 = por %p63, %p64
      %p67 = scmp.ne.s32.totalorder %s50, %s66
      %p68 = scmp.eq.s32.totalorder %s26, 0
      %p69 = por %p67, %p68
      %s71 = sadd.s32 %s70, 1
      %p74 = scmp.eq.s32.totalorder %s20, 1
      %p75 = scmp.ne.s32.totalorder %s70, %s72
      %p76 = scmp.eq.s32.totalorder %s20, 0
      %p77 = por %p75, %p76
      %p78 = scmp.ne.s32.totalorder %s70, %s72
      %p79 = scmp.eq.s32.totalorder %s25, 1
      %p80 = por %p78, %p79
      %p81 = scmp.ne.s32.totalorder %s72, %s73
      %p82 = scmp.eq.s32.totalorder %s25, 0
      %p83 = por %p81, %p82
      %p84 = scmp.ne.s32.totalorder %s72, %s73
      %p85 = scmp.eq.s32.totalorder %s26, 1
      %p86 = por %p84, %p85
      %p88 = scmp.ne.s32.totalorder %s73, %s87
      %p89 = scmp.eq.s32.totalorder %s26, 0
      %p90 = por %p88, %p89
      %s92 = sadd.s32 %s91, 1
      %p95 = scmp.eq.s32.totalorder %s20, 1
      %p96 = scmp.ne.s32.totalorder %s91, %s93
      %p97 = scmp.eq.s32.totalorder %s20, 0
      %p98 = por %p96, %p97
      %p99 = scmp.ne.s32.totalorder %s91, %s93
      %p100 = scmp.eq.s32.totalorder %s25, 1
      %p101 = por %p99, %p100
      %p102 = scmp.ne.s32.totalorder %s93, %s94
      %p103 = scmp.eq.s32.totalorder %s25, 0
      %p104 = por %p102, %p103
      %p105 = scmp.ne.s32.totalorder %s93, %s94
      %p106 = scmp.eq.s32.totalorder %s26, 1
      %p107 = por %p105, %p106
      %p109 = scmp.ne.s32.totalorder %s94, %s108
      %p110 = scmp.eq.s32.totalorder %s26, 0
      %p111 = por %p109, %p110
      %s113 = sadd.s32 %s112, 1
      %p116 = scmp.eq.s32.totalorder %s20, 1
      %p117 = scmp.ne.s32.totalorder %s112, %s114
      %p118 = scmp.eq.s32.totalorder %s20, 0
      %p119 = por %p117, %p118
      %p120 = scmp.ne.s32.totalorder %s112, %s114
      %p121 = scmp.eq.s32.totalorder %s25, 1
      %p122 = por %p120, %p121
      %p123 = scmp.ne.s32.totalorder %s114, %s115
      %p124 = scmp.eq.s32.totalorder %s25, 0
      %p125 = por %p123, %p124
      %p126 = scmp.ne.s32.totalorder %s114, %s115
      %p127 = scmp.eq.s32.totalorder %s26, 1
      %p128 = por %p126, %p127
      %p130 = scmp.ne.s32.totalorder %s115, %s129
      %p131 = scmp.eq.s32.totalorder %s26, 0
      %p132 = por %p130, %p131
      %s134 = sadd.s32 %s133, 1
      %p137 = scmp.eq.s32.totalorder %s20, 1
      %p138 = scmp.ne.s32.totalorder %s133, %s135
      %p139 = scmp.eq.s32.totalorder %s20, 0
      %p140 = por %p138, %p139
      %p141 = scmp.ne.s32.totalorder %s133, %s135
      %p142 = scmp.eq.s32.totalorder %s25, 1
      %p143 = por %p141, %p142
      %p144 = scmp.ne.s32.totalorder %s135, %s136
      %p145 = scmp.eq.s32.totalorder %s25, 0
      %p146 = por %p144, %p145
      %p147 = scmp.ne.s32.totalorder %s135, %s136
      %p148 = scmp.eq.s32.totalorder %s26, 1
      %p149 = por %p147, %p148
      %p151 = scmp.ne.s32.totalorder %s136, %s150
      %p152 = scmp.eq.s32.totalorder %s26, 0
      %p153 = por %p151, %p152
      %s155 = sadd.s32 %s154, 1
      %p158 = scmp.eq.s32.totalorder %s20, 1
      %p159 = scmp.ne.s32.totalorder %s154, %s156
      %p160 = scmp.eq.s32.totalorder %s20, 0
      %p161 = por %p159, %p160
      %p162 = scmp.ne.s32.totalorder %s154, %s156
      %p163 = scmp.eq.s32.totalorder %s25, 1
      %p164 = por %p162, %p163
      %p165 = scmp.ne.s32.totalorder %s156, %s157
      %p166 = scmp.eq.s32.totalorder %s25, 0
      %p167 = por %p165, %p166
      %p168 = scmp.ne.s32.totalorder %s156, %s157
      %p169 = scmp.eq.s32.totalorder %s26, 1
      %p170 = por %p168, %p169
      %p172 = scmp.ne.s32.totalorder %s157, %s171
      %p173 = scmp.eq.s32.totalorder %s26, 0
      %p174 = por %p172, %p173
      %s176 = sadd.s32 %s175, 1
      %p179 = scmp.eq.s32.totalorder %s20, 1
      %p180 = scmp.ne.s32.totalorder %s175, %s177
      %p181 = scmp.eq.s32.totalorder %s20, 0
      %p182 = por %p180, %p181
      %p183 = scmp.ne.s32.totalorder %s175, %s177
      %p184 = scmp.eq.s32.totalorder %s25, 1
      %p185 = por %p183, %p184
      %p186 = scmp.ne.s32.totalorder %s177, %s178
      %p187 = scmp.eq.s32.totalorder %s25, 0
      %p188 = por %p186, %p187
      %p189 = scmp.ne.s32.totalorder %s177, %s178
      %p190 = scmp.eq.s32.totalorder %s26, 1
      %p191 = por %p189, %p190
      %p193 = scmp.ne.s32.totalorder %s178, %s192
      %p194 = scmp.eq.s32.totalorder %s26, 0
      %p195 = por %p193, %p194
      %s196 = smul.u32 %s28, %s27
      %s197 = smul.u32 %s35, %s39
      %s198 = ssub.s32 %s196, %s197
      %p199 = scmp.eq.s32.totalorder %s198, 0
      %s201 = sadd.s32 %s200, 1
      %s202 = scalar_select %p199, %s200, %s201
      %p205 = pneg %p199
      %p206 = scmp.eq.s32.totalorder %s20, 1
      %p207 = por %p205, %p206
      %p208 = scmp.ne.s32.totalorder %s200, %s203
      %p209 = scmp.eq.s32.totalorder %s20, 0
      %p210 = por %p208, %p209
      %p211 = scmp.ne.s32.totalorder %s200, %s203
      %p212 = scmp.eq.s32.totalorder %s25, 1
      %p213 = por %p211, %p212
      %p214 = scmp.ne.s32.totalorder %s203, %s204
      %p215 = scmp.eq.s32.totalorder %s25, 0
      %p216 = por %p214, %p215
      %p217 = scmp.ne.s32.totalorder %s203, %s204
      %p218 = scmp.eq.s32.totalorder %s26, 1
      %p219 = por %p217, %p218
      %p221 = scmp.ne.s32.totalorder %s204, %s220
      %p222 = scmp.eq.s32.totalorder %s26, 0
      %p223 = por %p221, %p222
      %p224 = scmp.le.s32.totalorder 1, %s20
      %p225 = scmp.lt.s32.totalorder %s20, 3
      %p226 = pnand %p224, %p225
      %p227 = pneg %p226
      // Predicated region
      $region9: #{tpu_custom_call.1} parent=5 // pred_check
        _
      $region10: #{tpu_custom_call.1} parent=5 // pred_check_branch
        %229 = sbr.rel (%p226) target = $region12
      $region11: #{tpu_custom_call.1} parent=5 // pred_region
        %s230 = ssub.s32 %s20, 1
        // Predicated region
        $region13: #{tpu_custom_call.1} parent=11 // pred_check
          %p231 = pneg %p83
        $region14: #{tpu_custom_call.1} parent=11 // pred_check_branch
          %233 = sbr.rel (%p231) target = $region16
        $region15: #{tpu_custom_call.1} parent=11 // pred_region
          %s235 = ssub.s32 2048, 2048
          %236 = vsyncadd [#allocation9], %s235
          %s237 = sshll.u32 [#allocation8], 4
          %s238 = int_to_ptr.vmem [resolvable:$true] %s237
          %243 = dma.hbm_to_vmem [thread:$0]  %s1, 2048, %s238, [#allocation9], 64, 64, 4
        $region16: #{tpu_custom_call.1} parent=11 // pred_fallthru
          _
        // Predicated region
        $region17: #{tpu_custom_call.1} parent=11 // pred_check
          %p244 = pneg %p104
        $region18: #{tpu_custom_call.1} parent=11 // pred_check_branch
          %246 = sbr.rel (%p244) target = $region20
        $region19: #{tpu_custom_call.1} parent=11 // pred_region
          _
        $region20: #{tpu_custom_call.1} parent=11 // pred_fallthru
          _
        // Predicated region
        $region21: #{tpu_custom_call.1} parent=11 // pred_check
          %p247 = pneg %p125
        $region22: #{tpu_custom_call.1} parent=11 // pred_check_branch
          %249 = sbr.rel (%p247) target = $region24
        $region23: #{tpu_custom_call.1} parent=11 // pred_region
          _
        $region24: #{tpu_custom_call.1} parent=11 // pred_fallthru
          _
        // Predicated region
        $region25: #{tpu_custom_call.1} parent=11 // pred_check
          %p250 = pneg %p146
        $region26: #{tpu_custom_call.1} parent=11 // pred_check_branch
          %252 = sbr.rel (%p250) target = $region28
        $region27: #{tpu_custom_call.1} parent=11 // pred_region
          _
        $region28: #{tpu_custom_call.1} parent=11 // pred_fallthru
          _
        // Predicated region
        $region29: #{tpu_custom_call.1} parent=11 // pred_check
          %p253 = pneg %p167
        $region30: #{tpu_custom_call.1} parent=11 // pred_check_branch
          %255 = sbr.rel (%p253) target = $region32
        $region31: #{tpu_custom_call.1} parent=11 // pred_region
          %s257 = ssub.s32 1024, 1024
          %258 = vsyncadd [#allocation9], %s257
          %s259 = sshll.u32 [#allocation10], 4
          %s260 = int_to_ptr.vmem [resolvable:$true] %s259
          %265 = dma.hbm_to_vmem [thread:$0]  %s5, 1024, %s260, [#allocation9], 64, 64, 4
        $region32: #{tpu_custom_call.1} parent=11 // pred_fallthru
          _
        // Predicated region
        $region33: #{tpu_custom_call.1} parent=11 // pred_check
          %p266 = pneg %p188
        $region34: #{tpu_custom_call.1} parent=11 // pred_check_branch
          %268 = sbr.rel (%p266) target = $region36
        $region35: #{tpu_custom_call.1} parent=11 // pred_region
          _
        $region36: #{tpu_custom_call.1} parent=11 // pred_fallthru
          _
      $region12: #{tpu_custom_call.1} parent=5 // pred_fallthru
        _
      %p269 = scmp.lt.s32.totalorder %s20, 2
      // Predicated region
      $region37: #{tpu_custom_call.1} parent=5 // pred_check
        %p270 = pneg %p269
      $region38: #{tpu_custom_call.1} parent=5 // pred_check_branch
        %272 = sbr.rel (%p270) target = $region40
      $region39: #{tpu_custom_call.1} parent=5 // pred_region
        // Predicated region
        $region41: #{tpu_custom_call.1} parent=39 // pred_check
          %p273 = pneg %p56
        $region42: #{tpu_custom_call.1} parent=39 // pred_check_branch
          %275 = sbr.rel (%p273) target = $region44
        $region43: #{tpu_custom_call.1} parent=39 // pred_region
          %s276 = sand.u32 %s46, 1
          %s277 = scalar_lea.sflag [#allocation6], %s276
          %s278 = sand.u32 %s46, 1
          %s279 = smul.addr %s278, 32
          %s280 = scalar_lea.vmem [#allocation5], %s279
          %s281 = ssub.s32 1, %s27
          %s282 = smul.u32 %s28, %s281
          %s283 = smul.u32 2, %s282
          %s285 = ssub.s32 512, 512
          %286 = vsyncadd %s277, %s285
          %s287 = smul.addr %s283, 2
          %s288 = smul.addr %s287, 128
          %s289 = scalar_lea.hbm %s0, %s288
          %s290 = sshll.u32 %s280, 4
          %s291 = int_to_ptr.vmem [resolvable:$true] %s290
          %296 = dma.hbm_to_vmem [thread:$0]  %s289, 512, %s291, %s277, 256, 256, 16
        $region44: #{tpu_custom_call.1} parent=39 // pred_fallthru
          _
      $region40: #{tpu_custom_call.1} parent=5 // pred_fallthru
        _
      %p297 = scmp.le.s32.totalorder 1, %s20
      %p298 = scmp.lt.s32.totalorder %s20, 3
      %p299 = pnand %p297, %p298
      %p300 = pneg %p299
      // Predicated region
      $region45: #{tpu_custom_call.1} parent=5 // pred_check
        _
      $region46: #{tpu_custom_call.1} parent=5 // pred_check_branch
        %302 = sbr.rel (%p299) target = $region48
      $region47: #{tpu_custom_call.1} parent=5 // pred_region
        %s303 = ssub.s32 %s20, 1
        %s304 = sand.u32 %s49, 1
        %s305 = scalar_lea.sflag [#allocation6], %s304
        %s306 = sand.u32 %s49, 1
        %s307 = smul.addr %s306, 32
        %s308 = scalar_lea.vmem [#allocation5], %s307
        // Predicated region
        $region49: #{tpu_custom_call.1} parent=47 // pred_check
          %p309 = pneg %p62
        $region50: #{tpu_custom_call.1} parent=47 // pred_check_branch
          %311 = sbr.rel (%p309) target = $region52
        $region51: #{tpu_custom_call.1} parent=47 // pred_region
          %312 = dma.done %s305, 512
        $region52: #{tpu_custom_call.1} parent=47 // pred_fallthru
          _
        // Predicated region
        $region53: #{tpu_custom_call.1} parent=47 // pred_check
          %p313 = pneg %p83
        $region54: #{tpu_custom_call.1} parent=47 // pred_check_branch
          %315 = sbr.rel (%p313) target = $region56
        $region55: #{tpu_custom_call.1} parent=47 // pred_region
          %316 = dma.done [#allocation9], 2048
        $region56: #{tpu_custom_call.1} parent=47 // pred_fallthru
          _
        // Predicated region
        $region57: #{tpu_custom_call.1} parent=47 // pred_check
          %p317 = pneg %p167
        $region58: #{tpu_custom_call.1} parent=47 // pred_check_branch
          %319 = sbr.rel (%p317) target = $region60
        $region59: #{tpu_custom_call.1} parent=47 // pred_region
          %320 = dma.done [#allocation9], 1024
        $region60: #{tpu_custom_call.1} parent=47 // pred_fallthru
          _
        %s321 = sand.u32 %s49, 1
        %s322 = scalar_lea.sflag [#allocation6], %s321
        %s323 = sand.u32 %s49, 1
        %s324 = smul.addr %s323, 32
        %s325 = scalar_lea.vmem [#allocation5], %s324
        %p326 = pneg %p62
        %p327 = pneg %p59
        %p328 = pneg %p83
        %p329 = pneg %p80
        %p330 = pneg %p104
        %p331 = pneg %p101
        %p332 = pneg %p125
        %p333 = pneg %p122
        %p334 = pneg %p146
        %p335 = pneg %p143
        %p336 = pneg %p167
        %p337 = pneg %p164
        %p338 = pneg %p188
        %p339 = pneg %p185
        %p340 = pneg %p216
        %p341 = pneg %p213
        %s342 = sand.u32 %s203, 1
        %s343 = scalar_lea.sflag [#allocation7], %s342
        %s344 = sand.u32 %s203, 1
        %s345 = smul.addr %s344, 8
        %s346 = scalar_lea.vmem [#allocation11], %s345
        %s347 = ssub.s32 1, %s29
        %s348 = smul.u32 %s30, %s347
        %s349 = smul.u32 2, %s348
        %s350 = smul.u32 %s30, %s29
        %s351 = smul.u32 2, %s350
        %p353 = scmp.eq.s32.totalorder %s29, 0
        // Predicated region
        $region61: #{tpu_custom_call.1} parent=47 // pred_check
          %p354 = pneg %p353
        $region62: #{tpu_custom_call.1} parent=47 // pred_check_branch
          %356 = sbr.rel (%p354) target = $region64
        $region63: #{tpu_custom_call.1} parent=47 // pred_region
          %p357 = scmp.eq.s32.totalorder %s30, 0
          // Predicated region
          $region65: #{tpu_custom_call.1} parent=63 // pred_check
            %p358 = pneg %p357
          $region66: #{tpu_custom_call.1} parent=63 // pred_check_branch
            %360 = sbr.rel (%p358) target = $region68
          $region67: #{tpu_custom_call.1} parent=63 // pred_region
            %361 = vst [vmem:[#allocation3] sm:$0x3] 0.0
          $region68: #{tpu_custom_call.1} parent=63 // pred_fallthru
            _
          %v362 = vld [vmem:[%s308] sm:$0xff]
          %v363 = vld [vmem:[%s308 + $0x8] sm:$0xff]
          %v364 = vld [vmem:[%s308 + $0x10] sm:$0xff]
          %v365 = vld [vmem:[%s308 + $0x18] sm:$0xff]
          %v366 = vpack.c.bf16 %v364, %v362
          %v367 = vpack.c.bf16 %v365, %v363
          %v368 = vld [vmem:[#allocation8] sm:$0xf]
          %v369 = vld [vmem:[#allocation8 + $0x4] sm:$0xf]
          %v370 = vld [vmem:[#allocation8 + $0x8] sm:$0xf]
          %v371 = vld [vmem:[#allocation8 + $0xc] sm:$0xf]
          %v372 = vld [vmem:[#allocation8 + $0x10] sm:$0xf]
          %v373 = vld [vmem:[#allocation8 + $0x14] sm:$0xf]
          %v374 = vld [vmem:[#allocation8 + $0x18] sm:$0xf]
          %v375 = vld [vmem:[#allocation8 + $0x1c] sm:$0xf]
          %v376 = vld [vmem:[#allocation8 + $0x20] sm:$0xf]
          %v377 = vld [vmem:[#allocation8 + $0x24] sm:$0xf]
          %v378 = vld [vmem:[#allocation8 + $0x28] sm:$0xf]
          %v379 = vld [vmem:[#allocation8 + $0x2c] sm:$0xf]
          %v380 = vld [vmem:[#allocation8 + $0x30] sm:$0xf]
          %v381 = vld [vmem:[#allocation8 + $0x34] sm:$0xf]
          %v382 = vld [vmem:[#allocation8 + $0x38] sm:$0xf]
          %v383 = vld [vmem:[#allocation8 + $0x3c] sm:$0xf]
          %v384 = vld [vmem:[#allocation8 + $0x40] sm:$0xf]
          %v385 = vld [vmem:[#allocation8 + $0x44] sm:$0xf]
          %v386 = vld [vmem:[#allocation8 + $0x48] sm:$0xf]
          %v387 = vld [vmem:[#allocation8 + $0x4c] sm:$0xf]
          %v388 = vld [vmem:[#allocation8 + $0x50] sm:$0xf]
          %v389 = vld [vmem:[#allocation8 + $0x54] sm:$0xf]
          %v390 = vld [vmem:[#allocation8 + $0x58] sm:$0xf]
          %v391 = vld [vmem:[#allocation8 + $0x5c] sm:$0xf]
          %v392 = vld [vmem:[#allocation8 + $0x60] sm:$0xf]
          %v393 = vld [vmem:[#allocation8 + $0x64] sm:$0xf]
          %v394 = vld [vmem:[#allocation8 + $0x68] sm:$0xf]
          %v395 = vld [vmem:[#allocation8 + $0x6c] sm:$0xf]
          %v396 = vld [vmem:[#allocation8 + $0x70] sm:$0xf]
          %v397 = vld [vmem:[#allocation8 + $0x74] sm:$0xf]
          %v398 = vld [vmem:[#allocation8 + $0x78] sm:$0xf]
          %v399 = vld [vmem:[#allocation8 + $0x7c] sm:$0xf]
          %v400 = vld [vmem:[%s2] sm:$0x1]
          %v402 = vlaneseq
          %v403 = vshrl.u32 %v402, 7
          %v404 = vsub.s32 0, %v403
          %v405 = vrot.slane %v400, %v404
          %v439 = vunpack.c.l.b16 %v368
          %v440 = vunpack.c.l.b16 %v369
          %v441 = vunpack.c.l.b16 %v370
          %v442 = vunpack.c.l.b16 %v371
          %v443 = vunpack.c.l.b16 %v372
          %v444 = vunpack.c.l.b16 %v373
          %v445 = vunpack.c.l.b16 %v374
          %v446 = vunpack.c.l.b16 %v375
          %v447 = vunpack.c.l.b16 %v376
          %v448 = vunpack.c.l.b16 %v377
          %v449 = vunpack.c.l.b16 %v378
          %v450 = vunpack.c.l.b16 %v379
          %v451 = vunpack.c.l.b16 %v380
          %v452 = vunpack.c.l.b16 %v381
          %v453 = vunpack.c.l.b16 %v382
          %v454 = vunpack.c.l.b16 %v383
          %v455 = vunpack.c.l.b16 %v384
          %v456 = vunpack.c.l.b16 %v385
          %v457 = vunpack.c.l.b16 %v386
          %v458 = vunpack.c.l.b16 %v387
          %v459 = vunpack.c.l.b16 %v388
          %v460 = vunpack.c.l.b16 %v389
          %v461 = vunpack.c.l.b16 %v390
          %v462 = vunpack.c.l.b16 %v391
          %v463 = vunpack.c.l.b16 %v392
          %v464 = vunpack.c.l.b16 %v393
          %v465 = vunpack.c.l.b16 %v394
          %v466 = vunpack.c.l.b16 %v395
          %v467 = vunpack.c.l.b16 %v396
          %v468 = vunpack.c.l.b16 %v397
          %v469 = vunpack.c.l.b16 %v398
          %v470 = vunpack.c.l.b16 %v399
          %v471 = vpack.c.b16 %v440, %v439
          %v472 = vpack.c.b16 %v442, %v441
          %v473 = vpack.c.b16 %v444, %v443
          %v474 = vpack.c.b16 %v446, %v445
          %v475 = vpack.c.b16 %v448, %v447
          %v476 = vpack.c.b16 %v450, %v449
          %v477 = vpack.c.b16 %v452, %v451
          %v478 = vpack.c.b16 %v454, %v453
          %v479 = vpack.c.b16 %v456, %v455
          %v480 = vpack.c.b16 %v458, %v457
          %v481 = vpack.c.b16 %v460, %v459
          %v482 = vpack.c.b16 %v462, %v461
          %v483 = vpack.c.b16 %v464, %v463
          %v484 = vpack.c.b16 %v466, %v465
          %v485 = vpack.c.b16 %v468, %v467
          %v486 = vpack.c.b16 %v470, %v469
          %503 = vmatprep.subr.bf16.mxu0 0
          %504 = vmatpush1.bf16.msra.mxu0 %v478
          %505 = vmatprep.subr.bf16.mxu0 0
          %506 = vmatpush1.bf16.msra.mxu0 %v477
          %507 = vmatprep.subr.bf16.mxu0 0
          %508 = vmatpush1.bf16.msra.mxu0 %v476
          %509 = vmatprep.subr.bf16.mxu0 0
          %510 = vmatpush1.bf16.msra.mxu0 %v475
          %511 = vmatprep.subr.bf16.mxu0 0
          %512 = vmatpush1.bf16.msra.mxu0 %v474
          %513 = vmatprep.subr.bf16.mxu0 0
          %514 = vmatpush1.bf16.msra.mxu0 %v473
          %515 = vmatprep.subr.bf16.mxu0 0
          %516 = vmatpush1.bf16.msra.mxu0 %v472
          %517 = vmatprep.subr.bf16.mxu0 0
          %518 = vmatpush1.bf16.msra.mxu0 %v471
          %519 = vmatprep.subr.bf16.mxu0 0
          %520 = vmatpush2.bf16.msra.mxu0 %v486
          %521 = vmatprep.subr.bf16.mxu0 0
          %522 = vmatpush2.bf16.msra.mxu0 %v485
          %523 = vmatprep.subr.bf16.mxu0 0
          %524 = vmatpush2.bf16.msra.mxu0 %v484
          %525 = vmatprep.subr.bf16.mxu0 0
          %526 = vmatpush2.bf16.msra.mxu0 %v483
          %527 = vmatprep.subr.bf16.mxu0 0
          %528 = vmatpush2.bf16.msra.mxu0 %v482
          %529 = vmatprep.subr.bf16.mxu0 0
          %530 = vmatpush2.bf16.msra.mxu0 %v481
          %531 = vmatprep.subr.bf16.mxu0 0
          %532 = vmatpush2.bf16.msra.mxu0 %v480
          %533 = vmatprep.subr.bf16.mxu0 0
          %534 = vmatpush2.bf16.msra.mxu0 %v479
          %535 = vmatprep.mubr.bf16.mxu0 %v367
          %536 = vmatmul.mubr.bf16.gmra.mxu0 %v366
          %v537 = vpop.f32.mrf.mxu0
          %v538 = vadd.f32 %v405, %v537
          %v539 = vpop.f32.mrf.mxu0
          %v540 = vpop.f32.mrf.mxu0
          %v541 = vadd.f32 %v405, %v540
          %v542 = vpop.f32.mrf.mxu0
          %543 = vdwg.mxu0
          %v544 = vlaneseq
          %v545 = vshrl.u32 %v544, 7
          %v546 = vadd.s32 %v545, 8
          %s547 = smul.u32 %s30, 16
          %v548 = vstv %s547
          %v549 = vadd.s32 %v545, %v548
          %v550 = vadd.s32 %v546, %v548
          %vm551 = vcmp.lt.s32.totalorder %v549, 16
          %vm552 = vcmp.lt.s32.totalorder %v550, 16
          %v553 = vsel %vm551, %v538, 0.0
          %v554 = vsel %vm552, %v541, 0.0
          %v555 = vld [vmem:[#allocation3] sm:$0x3]
          %v556 = vadd.f32 %v553, %v554
          %v557 = vrot.slane %v556, 4
          %v558 = vadd.f32 %v556, %v557
          %v559 = vrot.slane %v558, 2
          %v560 = vadd.f32 %v558, %v559
          %v561 = vrot.slane %v560, 1
          %v562 = vadd.f32 %v560, %v561
          %v563 = vmul.f32 %v553, %v553
          %v564 = vmul.f32 %v554, %v554
          %v565 = vadd.f32 %v563, %v564
          %v566 = vrot.slane %v565, 4
          %v567 = vadd.f32 %v565, %v566
          %v568 = vrot.slane %v567, 2
          %v569 = vadd.f32 %v567, %v568
          %v570 = vrot.slane %v569, 1
          %v571 = vadd.f32 %v569, %v570
          %vm572 = vcmask 1040384
          %v573 = vsel %vm572, %v562, %v571
          %v574 = vadd.f32 %v555, %v573
          %575 = vst [vmem:[#allocation3] sm:$0x3] %v574
          %v576 = vpack.c.bf16 %v541, %v538
          %v578 = vunpack.c.l.b16 %v576
          %v579 = vunpack.c.h.b16 %v576
          %v580 = vpack.c.b16 %v578, %v578
          %v581 = vpack.c.b16 %v579, %v579
          %s584 = sshra.s32 %s547, 3
          %s585 = sand.u32 %s547, 7
          %s586 = smul.addr %s584, 4
          %s587 = scalar_lea.vmem [#allocation2], %s586
          %588 = vst [vmem:[%s587] sm:$0xf] %v580
          %589 = vst [vmem:[%s587 + $0x4] sm:$0xf] %v581
          // Predicated region
          $region69: #{tpu_custom_call.1} parent=63 // pred_check
            %p590 = pneg %p357
          $region70: #{tpu_custom_call.1} parent=63 // pred_check_branch
            %592 = sbr.rel (%p590) target = $region72
          $region71: #{tpu_custom_call.1} parent=63 // pred_region
            %v593 = vld [vmem:[#allocation3] sm:$0x1]
            %v594 = vmul.f32 %v593, 0.0625
            %v595 = vld [vmem:[#allocation3 + $0x1] sm:$0x1]
            %v596 = vmul.f32 %v595, 0.0625
            %v597 = vmul.f32 %v594, %v594
            %v598 = vsub.f32 %v596, %v597
            %v599 = vadd.f32 %v598, 1e-05
            %v600 = vrsqrt.pop %v599
            %v601 = vld [vmem:[%s3] sm:$0x1]
            %v602 = vmul.f32 %v601, %v600
            %v603 = vld [vmem:[%s4] sm:$0x1]
            %v604 = vmul.f32 %v594, %v602
            %v605 = vsub.f32 %v603, %v604
            %606 = vst [vmem:[#allocation4] sm:$0x1] %v602
            %607 = vst [vmem:[#allocation4 + $0x1] sm:$0x1] %v605
          $region72: #{tpu_custom_call.1} parent=63 // pred_fallthru
            _
        $region64: #{tpu_custom_call.1} parent=47 // pred_fallthru
          _
        %p608 = scmp.eq.s32.totalorder %s29, 1
        // Predicated region
        $region73: #{tpu_custom_call.1} parent=47 // pred_check
          %p609 = pneg %p608
        $region74: #{tpu_custom_call.1} parent=47 // pred_check_branch
          %611 = sbr.rel (%p609) target = $region76
        $region75: #{tpu_custom_call.1} parent=47 // pred_region
          %s612 = smul.u32 %s30, 16
          %s613 = sshra.s32 %s612, 3
          %s614 = sand.u32 %s612, 7
          %s615 = smul.addr %s613, 4
          %s616 = scalar_lea.vmem [#allocation2], %s615
          %v617 = vld [vmem:[%s616] sm:$0xf]
          %v618 = vld [vmem:[%s616 + $0x4] sm:$0xf]
          %v619 = vunpack.c.l.bf16 %v617
          %v620 = vunpack.c.l.bf16 %v618
          %v621 = vld [vmem:[#allocation4] sm:$0x1]
          %v622 = vlaneseq
          %v623 = vshrl.u32 %v622, 7
          %v624 = vsub.s32 0, %v623
          %v625 = vrot.slane %v621, %v624
          %v626 = vmul.f32 %v619, %v625
          %v627 = vmul.f32 %v620, %v625
          %v628 = vld [vmem:[#allocation4 + $0x1] sm:$0x1]
          %v629 = vlaneseq
          %v630 = vshrl.u32 %v629, 7
          %v631 = vsub.s32 0, %v630
          %v632 = vrot.slane %v628, %v631
          %v633 = vadd.f32 %v626, %v632
          %v634 = vadd.f32 %v627, %v632
          %v635 = vmax.f32 %v633, 0.0
          %v636 = vmax.f32 %v634, 0.0
          %v637 = vpack.c.bf16 %v636, %v635
          %v638 = vld [vmem:[#allocation10] sm:$0xf]
          %v639 = vld [vmem:[#allocation10 + $0x4] sm:$0xf]
          %v640 = vld [vmem:[#allocation10 + $0x8] sm:$0xf]
          %v641 = vld [vmem:[#allocation10 + $0xc] sm:$0xf]
          %v642 = vld [vmem:[#allocation10 + $0x10] sm:$0xf]
          %v643 = vld [vmem:[#allocation10 + $0x14] sm:$0xf]
          %v644 = vld [vmem:[#allocation10 + $0x18] sm:$0xf]
          %v645 = vld [vmem:[#allocation10 + $0x1c] sm:$0xf]
          %v646 = vld [vmem:[#allocation10 + $0x20] sm:$0xf]
          %v647 = vld [vmem:[#allocation10 + $0x24] sm:$0xf]
          %v648 = vld [vmem:[#allocation10 + $0x28] sm:$0xf]
          %v649 = vld [vmem:[#allocation10 + $0x2c] sm:$0xf]
          %v650 = vld [vmem:[#allocation10 + $0x30] sm:$0xf]
          %v651 = vld [vmem:[#allocation10 + $0x34] sm:$0xf]
          %v652 = vld [vmem:[#allocation10 + $0x38] sm:$0xf]
          %v653 = vld [vmem:[#allocation10 + $0x3c] sm:$0xf]
          %v654 = vld [vmem:[%s6] sm:$0x1]
          %v656 = vlaneseq
          %v657 = vshrl.u32 %v656, 7
          %v658 = vsub.s32 0, %v657
          %v659 = vrot.slane %v654, %v658
          %v677 = vunpack.c.l.b16 %v638
          %v678 = vunpack.c.l.b16 %v639
          %v679 = vunpack.c.l.b16 %v640
          %v680 = vunpack.c.l.b16 %v641
          %v681 = vunpack.c.l.b16 %v642
          %v682 = vunpack.c.l.b16 %v643
          %v683 = vunpack.c.l.b16 %v644
          %v684 = vunpack.c.l.b16 %v645
          %v685 = vunpack.c.l.b16 %v646
          %v686 = vunpack.c.l.b16 %v647
          %v687 = vunpack.c.l.b16 %v648
          %v688 = vunpack.c.l.b16 %v649
          %v689 = vunpack.c.l.b16 %v650
          %v690 = vunpack.c.l.b16 %v651
          %v691 = vunpack.c.l.b16 %v652
          %v692 = vunpack.c.l.b16 %v653
          %v693 = vpack.c.b16 %v678, %v677
          %v694 = vpack.c.b16 %v680, %v679
          %v695 = vpack.c.b16 %v682, %v681
          %v696 = vpack.c.b16 %v684, %v683
          %v697 = vpack.c.b16 %v686, %v685
          %v698 = vpack.c.b16 %v688, %v687
          %v699 = vpack.c.b16 %v690, %v689
          %v700 = vpack.c.b16 %v692, %v691
          %709 = vmatprep.subr.bf16.mxu0 0
          %710 = vmatpush1.bf16.msra.mxu0 %v700
          %711 = vmatprep.subr.bf16.mxu0 0
          %712 = vmatpush1.bf16.msra.mxu0 %v699
          %713 = vmatprep.subr.bf16.mxu0 0
          %714 = vmatpush1.bf16.msra.mxu0 %v698
          %715 = vmatprep.subr.bf16.mxu0 0
          %716 = vmatpush1.bf16.msra.mxu0 %v697
          %717 = vmatprep.subr.bf16.mxu0 0
          %718 = vmatpush1.bf16.msra.mxu0 %v696
          %719 = vmatprep.subr.bf16.mxu0 0
          %720 = vmatpush1.bf16.msra.mxu0 %v695
          %721 = vmatprep.subr.bf16.mxu0 0
          %722 = vmatpush1.bf16.msra.mxu0 %v694
          %723 = vmatprep.subr.bf16.mxu0 0
          %724 = vmatpush1.bf16.msra.mxu0 %v693
          %725 = vmatprep.subr.bf16.mxu0 0
          %726 = vmatpush2.bf16.msra.mxu0 0
          %727 = vmatprep.subr.bf16.mxu0 0
          %728 = vmatpush2.bf16.msra.mxu0 0
          %729 = vmatprep.subr.bf16.mxu0 0
          %730 = vmatpush2.bf16.msra.mxu0 0
          %731 = vmatprep.subr.bf16.mxu0 0
          %732 = vmatpush2.bf16.msra.mxu0 0
          %733 = vmatprep.subr.bf16.mxu0 0
          %734 = vmatpush2.bf16.msra.mxu0 0
          %735 = vmatprep.subr.bf16.mxu0 0
          %736 = vmatpush2.bf16.msra.mxu0 0
          %737 = vmatprep.subr.bf16.mxu0 0
          %738 = vmatpush2.bf16.msra.mxu0 0
          %739 = vmatprep.subr.bf16.mxu0 0
          %740 = vmatpush2.bf16.msra.mxu0 0
          %741 = vmatprep.mubr.bf16.mxu0 0
          %742 = vmatmul.mubr.bf16.gmra.mxu0 %v637
          %v743 = vpop.f32.mrf.mxu0
          %v744 = vadd.f32 %v659, %v743
          %v745 = vpop.f32.mrf.mxu0
          %v746 = vpop.f32.mrf.mxu0
          %v747 = vadd.f32 %v659, %v746
          %v748 = vpop.f32.mrf.mxu0
          %749 = vdwg.mxu0
          %v750 = vlaneseq
          %v751 = vand.u32 %v750, 127
          %vm752 = vcmp.ge.s32.totalorder %v751, 16
          %vm753 = vcmp.lt.s32.totalorder %v751, 32
          %vm754 = vmand %vm752, %vm753
          %v755 = vmul.f32 %v744, 0.5
          %v756 = vmul.f32 %v747, 0.5
          %v757 = vmul.f32 %v755, 1.442695
          %v758 = vpow.pop %v757
          %v759 = vmul.f32 %v756, 1.442695
          %v760 = vpow.pop %v759
          %v761 = vsel %vm754, %v758, %v744
          %v762 = vsel %vm754, %v760, %v747
          %v763 = vpack.c.bf16 %v762, %v761
          %v765 = vunpack.c.l.b16 %v763
          %v766 = vunpack.c.h.b16 %v763
          %v767 = vpack.c.b16 %v765, %v765
          %v768 = vpack.c.b16 %v766, %v766
          %771 = vst [vmem:[%s346] sm:$0xf] %v767
          %772 = vst [vmem:[%s346 + $0x4] sm:$0xf] %v768
        $region76: #{tpu_custom_call.1} parent=47 // pred_fallthru
          _
        %s773 = sand.u32 %s203, 1
        %s774 = scalar_lea.sflag [#allocation7], %s773
        %s775 = sand.u32 %s203, 1
        %s776 = smul.addr %s775, 8
        %s777 = scalar_lea.vmem [#allocation11], %s776
        // Predicated region
        $region77: #{tpu_custom_call.1} parent=47 // pred_check
          %p778 = pneg %p213
        $region78: #{tpu_custom_call.1} parent=47 // pred_check_branch
          %780 = sbr.rel (%p778) target = $region80
        $region79: #{tpu_custom_call.1} parent=47 // pred_region
          %s781 = smul.u32 %s30, %s29
          %s782 = smul.u32 2, %s781
          %s784 = ssub.s32 128, 128
          %785 = vsyncadd %s774, %s784
          %s786 = smul.addr %s782, 64
          %s787 = scalar_lea.hbm %s7, %s786
          %s788 = sshll.u32 %s777, 4
          %s789 = int_to_ptr.vmem [resolvable:$true] %s788
          %794 = dma.vmem_to_hbm [thread:$0]  %s789, 128, %s787, %s774, 64, 64, 4
        $region80: #{tpu_custom_call.1} parent=47 // pred_fallthru
          _
      $region48: #{tpu_custom_call.1} parent=5 // pred_fallthru
        _
      %p795 = scmp.le.s32.totalorder 2, %s20
      // Predicated region
      $region81: #{tpu_custom_call.1} parent=5 // pred_check
        %p796 = pneg %p795
      $region82: #{tpu_custom_call.1} parent=5 // pred_check_branch
        %798 = sbr.rel (%p796) target = $region84
      $region83: #{tpu_custom_call.1} parent=5 // pred_region
        %s799 = ssub.s32 %s20, 2
        // Predicated region
        $region85: #{tpu_custom_call.1} parent=83 // pred_check
          %p800 = pneg %p219
        $region86: #{tpu_custom_call.1} parent=83 // pred_check_branch
          %802 = sbr.rel (%p800) target = $region88
        $region87: #{tpu_custom_call.1} parent=83 // pred_region
          %s803 = sand.u32 %s204, 1
          %s804 = scalar_lea.sflag [#allocation7], %s803
          %s805 = sand.u32 %s204, 1
          %s806 = smul.addr %s805, 8
          %s807 = scalar_lea.vmem [#allocation11], %s806
          %808 = dma.done %s804, 128
        $region88: #{tpu_custom_call.1} parent=83 // pred_fallthru
          _
      $region84: #{tpu_custom_call.1} parent=5 // pred_fallthru
        _
    $region6: #{tpu_custom_call.1} parent=1 // loop_footer
      %s24 = sadd.s32 1, %s20
    $region7: #{tpu_custom_call.1} parent=1 // loop_footer_branch
      %19 = sbr.rel target = $region3
    $region8: #{tpu_custom_call.1} parent=1 // loop_exit
      _
    %809 = vsyncpa [#allocation6], 1
    %s810 = scalar_lea.sflag [#allocation6], 1
    %811 = vsyncpa %s810, 1
    %812 = vsyncpa [#allocation9], 1
    %813 = vsyncpa [#allocation7], 1
    %s814 = scalar_lea.sflag [#allocation7], 1
    %815 = vsyncpa %s814, 1

</llo_original>
